<compile_context>
chip_gen: v7x
topology: tpu7x:2x2x1
jax: 0.10.0
libtpu: 0.0.40
codegen_flags: <defaults>
</compile_context>

<pallas_src>
import jax
import jax.numpy as jnp
from jax.experimental import pallas as pl
from jax.experimental.pallas import tpu as pltpu

_LANE = 128


def _iou_partials_kernel(x_ref, t_ref, inter_ref, total_ref):
    """Accumulate per-vreg (8, 128) partial sums of x*t and x+t."""
    step = pl.program_id(1)  # reduction axis (last, "arbitrary")

    @pl.when(step == 0)
    def _init():
        inter_ref[...] = jnp.zeros_like(inter_ref)
        total_ref[...] = jnp.zeros_like(total_ref)

    x = x_ref[...].astype(jnp.float32)
    t = t_ref[...].astype(jnp.float32)
    br = x.shape[0]

    # Reshape splits the sublane axis into whole (8, 128) vregs (no tile
    # boundary crossing); the axis-0 sum is pure VALU work, keeping the hot
    # loop vld + VALU while HBM-bound.  The single cross-lane/sublane reduce
    # happens once in the wrapper.
    inter_ref[...] += jnp.sum((x * t).reshape(br // 8, 8, _LANE), axis=0)
    total_ref[...] += jnp.sum((x + t).reshape(br // 8, 8, _LANE), axis=0)


def _sublane_multiple(dtype):
    # f32 -> 8, bf16 -> 16, int8/bool -> 32 (sub-32-bit dtypes pack sublanes).
    return max(8, 32 // jnp.dtype(dtype).itemsize)


def _device_kind():
    try:
        return jax.devices()[0].device_kind.lower()
    except Exception:  # pragma: no cover - defensive fallback
        return ""


def _per_buffer_bytes(kind):
    # v6e/v7x: 4 MiB buffers -> 2 inputs x 2 buffers = 16 MiB, under the
    # 32 MiB default scoped VMEM (v7x physical VMEM is 64 MiB/TC).
    # v5e (and unknown chips): 2 MiB buffers -> 8 MiB total, under the 16 MiB
    # default scoped VMEM, so no vmem_limit_bytes override anywhere.
    if ("v6" in kind) or ("v7" in kind) or ("7x" in kind):
        return 4 * 1024 * 1024
    return 2 * 1024 * 1024


def _num_core_splits(kind):
    # v7x has 2 TensorCores per chip; shard the row axis across them via the
    # leading "parallel" grid axis.  v5e/v6e have a single TC.
    if ("v7" in kind) or ("7x" in kind):
        return 2
    return 1


def iou_pallas(inputs, targets, smooth=1.0, *,
               min_pallas_elems=1 << 20, num_splits=None):
    """Smooth IoU over all elements, matching the PyTorch module exactly."""
    assert inputs.shape == targets.shape, "inputs/targets must match"
    n = inputs.size

    if n < min_pallas_elems:
        # Tiny inputs: pallas_call dispatch + DMA ramp dwarfs the math.
        x = inputs.astype(jnp.float32)
        t = targets.astype(jnp.float32)
        intersection = jnp.sum(x * t)
        total = jnp.sum(x + t)
        return (intersection + smooth) / (total - intersection + smooth)

    kind = _device_kind()
    if num_splits is None:
        num_splits = _num_core_splits(kind)

    sub = max(_sublane_multiple(inputs.dtype), _sublane_multiple(targets.dtype))
    item = max(jnp.dtype(inputs.dtype).itemsize,
               jnp.dtype(targets.dtype).itemsize)

    # Byte-budget-driven tile height (constant bytes per buffer across dtypes).
    cap_rows = (_per_buffer_bytes(kind) // (_LANE * item)) // sub * sub
    cap_rows = max(sub, cap_rows)

    rows = pl.cdiv(n, _LANE)
    rows_per_split = max(sub, pl.cdiv(pl.cdiv(rows, num_splits), sub) * sub)
    block_rows = min(cap_rows, rows_per_split)
    steps = pl.cdiv(rows_per_split, block_rows)
    rows_per_split = steps * block_rows
    total_rows = num_splits * rows_per_split
    padded = total_rows * _LANE

    def to_slab(a):
        flat = a.reshape(-1)
        if padded != n:  # zero padding contributes 0 to both sums
            flat = jnp.pad(flat, (0, padded - n))
        return flat.reshape(total_rows, _LANE)

    in_map = lambda c, i: (c * steps + i, 0)   # split-major row blocks
    out_map = lambda c, i: (c, 0, 0)           # one partial tile per split

    inter_p, total_p = pl.pallas_call(
        _iou_partials_kernel,
        out_shape=(
            jax.ShapeDtypeStruct((num_splits, 8, _LANE), jnp.float32),
            jax.ShapeDtypeStruct((num_splits, 8, _LANE), jnp.float32),
        ),
        grid=(num_splits, steps),
        in_specs=[
            pl.BlockSpec((block_rows, _LANE), in_map),  # inputs
            pl.BlockSpec((block_rows, _LANE), in_map),  # targets
        ],
        out_specs=(
            pl.BlockSpec((None, 8, _LANE), out_map),    # intersection partials
            pl.BlockSpec((None, 8, _LANE), out_map),    # total partials
        ),
        compiler_params=pltpu.CompilerParams(
            dimension_semantics=("parallel", "arbitrary"),
        ),
        cost_estimate=pl.CostEstimate(
            flops=3 * n,
            transcendentals=0,
            bytes_accessed=n * (jnp.dtype(inputs.dtype).itemsize
                                + jnp.dtype(targets.dtype).itemsize)
            + 2 * num_splits * 8 * _LANE * 4,
        ),
    )(to_slab(inputs), to_slab(targets))

    # Tiny cross-split / cross-lane combine + the IoU formula in the wrapper.
    intersection = jnp.sum(inter_p)
    total = jnp.sum(total_p)
    union = total - intersection
    return (intersection + smooth) / (union + smooth)


if __name__ == "__main__":
    key = jax.random.PRNGKey(0)
    k1, k2, k3, k4 = jax.random.split(key, 4)

    # Small segmentation-style NCHW case from the module spec.
    x_small = jax.random.uniform(k1, (2, 4, 16, 16), dtype=jnp.float32)
    t_small = (jax.random.uniform(k2, (2, 4, 16, 16)) > 0.5).astype(jnp.float32)

    # Force the Pallas path even at this tiny size so the kernel is exercised.
    got = iou_pallas(x_small, t_small, smooth=1.0, min_pallas_elems=0)
    jax.block_until_ready(got)
    inter = jnp.sum(x_small * t_small)
    total = jnp.sum(x_small + t_small)
    ref = (inter + 1.0) / (total - inter + 1.0)
    assert jnp.allclose(got, ref, rtol=1e-5, atol=1e-5), (got, ref)

    # Larger case: exercises the multi-step pipelined grid and the 2-way
    # core-split code path (correct on 1-TC chips too; parallel on v7x).
    x_big = jax.random.uniform(k3, (4, 4, 512, 512), dtype=jnp.float32)
    t_big = (jax.random.uniform(k4, (4, 4, 512, 512)) > 0.5).astype(jnp.float32)
    got_big = iou_pallas(x_big, t_big, smooth=1.0, num_splits=2)
    jax.block_until_ready(got_big)
    inter_b = jnp.sum(x_big * t_big)
    total_b = jnp.sum(x_big + t_big)
    ref_big = (inter_b + 1.0) / (total_b - inter_b + 1.0)
    assert jnp.allclose(got_big, ref_big, rtol=1e-4, atol=1e-4), (got_big, ref_big)

    print("KERNEL_OK")
</pallas_src>

<mosaic_0001>
module attributes {stable_mosaic.version = 11 : i64} {
  func.func @_iou_partials_kernel(%arg0: i32, %arg1: i32, %arg2: memref<16x128xf32, #tpu.memory_space<vmem>>, %arg3: memref<16x128xf32, #tpu.memory_space<vmem>>, %arg4: memref<1x8x128xf32, #tpu.memory_space<vmem>>, %arg5: memref<1x8x128xf32, #tpu.memory_space<vmem>>) attributes {dimension_semantics = [#tpu.dimension_semantics<parallel>, #tpu.dimension_semantics<arbitrary>], iteration_bounds = array<i64: 1, 1>, scalar_prefetch = 0 : i64, scratch_operands = 0 : i64, tpu.core_type = #tpu.core_type<tc>, window_params = [{transform_indices = @transform_0, window_bounds = array<i64: 16, 128>}, {transform_indices = @transform_1, window_bounds = array<i64: 16, 128>}, {transform_indices = @transform_2, window_bounds = array<i64: 1, 8, 128>}, {transform_indices = @transform_3, window_bounds = array<i64: 1, 8, 128>}]} {
    %c0_i32 = arith.constant 0 : i32
    %0 = arith.cmpi eq, %arg1, %c0_i32 : i32
    %1 = arith.extui %0 : i1 to i32
    %c0_i32_0 = arith.constant 0 : i32
    %2 = arith.cmpi ne, %1, %c0_i32_0 : i32
    scf.if %2 {
      %cst_17 = arith.constant 0.000000e+00 : f32
      %23 = vector.broadcast %cst_17 : f32 to vector<8x128xf32>
      %c0_18 = arith.constant 0 : index
      %c0_19 = arith.constant 0 : index
      %c0_20 = arith.constant 0 : index
      %24 = vector.load %arg4[%c0_18, %c0_19, %c0_20] : memref<1x8x128xf32, #tpu.memory_space<vmem>>, vector<1x8x128xf32>
      %25 = vector.shape_cast %24 : vector<1x8x128xf32> to vector<8x128xf32>
      %26 = vector.shape_cast %23 : vector<8x128xf32> to vector<1x8x128xf32>
      tpu.vector_store %arg4[%c0_18, %c0_19, %c0_20], %26 {strides = array<i32>} : memref<1x8x128xf32, #tpu.memory_space<vmem>>, vector<1x8x128xf32>,
      %cst_21 = arith.constant 0.000000e+00 : f32
      %27 = vector.broadcast %cst_21 : f32 to vector<8x128xf32>
      %c0_22 = arith.constant 0 : index
      %c0_23 = arith.constant 0 : index
      %c0_24 = arith.constant 0 : index
      %28 = vector.load %arg5[%c0_22, %c0_23, %c0_24] : memref<1x8x128xf32, #tpu.memory_space<vmem>>, vector<1x8x128xf32>
      %29 = vector.shape_cast %28 : vector<1x8x128xf32> to vector<8x128xf32>
      %30 = vector.shape_cast %27 : vector<8x128xf32> to vector<1x8x128xf32>
      tpu.vector_store %arg5[%c0_22, %c0_23, %c0_24], %30 {strides = array<i32>} : memref<1x8x128xf32, #tpu.memory_space<vmem>>, vector<1x8x128xf32>,
    } else {
    }
    %c0 = arith.constant 0 : index
    %c0_1 = arith.constant 0 : index
    %3 = vector.load %arg2[%c0, %c0_1] : memref<16x128xf32, #tpu.memory_space<vmem>>, vector<16x128xf32>
    %c0_2 = arith.constant 0 : index
    %c0_3 = arith.constant 0 : index
    %4 = vector.load %arg3[%c0_2, %c0_3] : memref<16x128xf32, #tpu.memory_space<vmem>>, vector<16x128xf32>
    %c0_4 = arith.constant 0 : index
    %c0_5 = arith.constant 0 : index
    %c0_6 = arith.constant 0 : index
    %5 = vector.load %arg4[%c0_4, %c0_5, %c0_6] : memref<1x8x128xf32, #tpu.memory_space<vmem>>, vector<1x8x128xf32>
    %6 = vector.shape_cast %5 : vector<1x8x128xf32> to vector<8x128xf32>
    %7 = arith.mulf %3, %4 : vector<16x128xf32>
    %8 = vector.shape_cast %7 : vector<16x128xf32> to vector<2x8x128xf32>
    %cst = arith.constant dense<0.000000e+00> : vector<8x128xf32>
    %9 = vector.multi_reduction <add>, %8, %cst [0] : vector<2x8x128xf32> to vector<8x128xf32>
    %10 = arith.addf %6, %9 : vector<8x128xf32>
    %c0_7 = arith.constant 0 : index
    %c0_8 = arith.constant 0 : index
    %c0_9 = arith.constant 0 : index
    %11 = vector.load %arg4[%c0_7, %c0_8, %c0_9] : memref<1x8x128xf32, #tpu.memory_space<vmem>>, vector<1x8x128xf32>
    %12 = vector.shape_cast %11 : vector<1x8x128xf32> to vector<8x128xf32>
    %13 = vector.shape_cast %10 : vector<8x128xf32> to vector<1x8x128xf32>
    tpu.vector_store %arg4[%c0_7, %c0_8, %c0_9], %13 {strides = array<i32>} : memref<1x8x128xf32, #tpu.memory_space<vmem>>, vector<1x8x128xf32>,
    %c0_10 = arith.constant 0 : index
    %c0_11 = arith.constant 0 : index
    %c0_12 = arith.constant 0 : index
    %14 = vector.load %arg5[%c0_10, %c0_11, %c0_12] : memref<1x8x128xf32, #tpu.memory_space<vmem>>, vector<1x8x128xf32>
    %15 = vector.shape_cast %14 : vector<1x8x128xf32> to vector<8x128xf32>
    %16 = arith.addf %3, %4 : vector<16x128xf32>
    %17 = vector.shape_cast %16 : vector<16x128xf32> to vector<2x8x128xf32>
    %cst_13 = arith.constant dense<0.000000e+00> : vector<8x128xf32>
    %18 = vector.multi_reduction <add>, %17, %cst_13 [0] : vector<2x8x128xf32> to vector<8x128xf32>
    %19 = arith.addf %15, %18 : vector<8x128xf32>
    %c0_14 = arith.constant 0 : index
    %c0_15 = arith.constant 0 : index
    %c0_16 = arith.constant 0 : index
    %20 = vector.load %arg5[%c0_14, %c0_15, %c0_16] : memref<1x8x128xf32, #tpu.memory_space<vmem>>, vector<1x8x128xf32>
    %21 = vector.shape_cast %20 : vector<1x8x128xf32> to vector<8x128xf32>
    %22 = vector.shape_cast %19 : vector<8x128xf32> to vector<1x8x128xf32>
    tpu.vector_store %arg5[%c0_14, %c0_15, %c0_16], %22 {strides = array<i32>} : memref<1x8x128xf32, #tpu.memory_space<vmem>>, vector<1x8x128xf32>,
    return
  }
  func.func @transform_0(%arg0: i32, %arg1: i32) -> (i32, i32) {
    %c1_i32 = arith.constant 1 : i32
    %0 = arith.muli %arg0, %c1_i32 : i32
    %1 = arith.addi %0, %arg1 : i32
    %c0_i32 = arith.constant 0 : i32
    %c0_i32_0 = arith.constant 0 : i32
    return %1, %c0_i32 : i32, i32
  }
  func.func @transform_1(%arg0: i32, %arg1: i32) -> (i32, i32) {
    %c1_i32 = arith.constant 1 : i32
    %0 = arith.muli %arg0, %c1_i32 : i32
    %1 = arith.addi %0, %arg1 : i32
    %c0_i32 = arith.constant 0 : i32
    %c0_i32_0 = arith.constant 0 : i32
    return %1, %c0_i32 : i32, i32
  }
  func.func @transform_2(%arg0: i32, %arg1: i32) -> (i32, i32, i32) {
    %c0_i32 = arith.constant 0 : i32
    %c0_i32_0 = arith.constant 0 : i32
    %c0_i32_1 = arith.constant 0 : i32
    return %arg0, %c0_i32, %c0_i32_0 : i32, i32, i32
  }
  func.func @transform_3(%arg0: i32, %arg1: i32) -> (i32, i32, i32) {
    %c0_i32 = arith.constant 0 : i32
    %c0_i32_0 = arith.constant 0 : i32
    %c0_i32_1 = arith.constant 0 : i32
    return %arg0, %c0_i32, %c0_i32_0 : i32, i32, i32
  }
}

</mosaic_0001>

<llo_original>
// kernel: tpu_custom_call.1
$region0: #{tpu_custom_call.1}
  #allocation0 [shape = 'u32[]', space=smem, size = 0x4, offset = 0x4, fixed_abs, tag = 'smem constant byte address 0x4 - core index']
  #allocation1 [shape = 'u32[144,128]{1,0:T(1,128)}', space=vmem, size = 0x12000, scoped, tag = 'internal scratch']
  %s0 = inlined_call_operand.hbm [shape: f32[16,128], index: 0, kind: input, shape index: {}]
  %s1 = inlined_call_operand.hbm [shape: f32[16,128], index: 1, kind: input, shape index: {}]
  %s2 = inlined_call_operand.hbm [shape: f32[1,8,128], index: 2, kind: output, shape index: {0}]
  %s3 = inlined_call_operand.hbm [shape: f32[1,8,128], index: 3, kind: output, shape index: {1}]
  %4 = xla_tuple %s2, %s3
  %s5 = sld [smem:[#allocation0]]
  $region38: #{tpu_custom_call.1} parent=0
    _
  %s7 = ssub.s32 1, %s5
  %s8 = scalar_select 0, %s7, %s5
  $region1: #{tpu_custom_call.1} parent=0
    #allocation2 [shape = 'u8[8192]{0}', space=vmem, size = 0x2000, scoped, tag = 'input window, operand 0, single buffered']
    #allocation3 [shape = 's32[1]{0}', space=sflag, size = 0x4, scoped, tag = 'scoped memory for tpu_custom_call.1']
    #allocation4 [shape = 's32[1]{0}', space=sflag, size = 0x4, scoped, tag = 'scoped memory for tpu_custom_call.1']
    #allocation5 [shape = 'u8[8192]{0}', space=vmem, size = 0x2000, scoped, tag = 'input window, operand 1, single buffered']
    #allocation6 [shape = 's32[1]{0}', space=sflag, size = 0x4, scoped, tag = 'scoped memory for tpu_custom_call.1']
    #allocation7 [shape = 'u8[4096]{0}', space=vmem, size = 0x1000, scoped, tag = 'output window, operand 0, single buffered']
    #allocation8 [shape = 'u8[4096]{0}', space=vmem, size = 0x1000, scoped, tag = 'output window, operand 1, single buffered']
    #allocation9 [shape = 's32[1]{0}', space=sflag, size = 0x4, scoped, tag = 'scoped memory for tpu_custom_call.1']
    %9 = vsyncpa [#allocation3], 0
    %10 = vsyncpa [#allocation6], 0
    %11 = vsyncpa [#allocation4], 0
    %12 = vsyncpa [#allocation9], 0
    // Predicated region
    $region2: #{tpu_custom_call.1} parent=1 // pred_check
      _
    $region3: #{tpu_custom_call.1} parent=1 // pred_check_branch
      %14 = sbr.rel (0) target = $region5
    $region4: #{tpu_custom_call.1} parent=1 // pred_region
      %s15 = sadd.s32 0, 0
      %s16 = smul.u32 2, %s15
      %s18 = ssub.s32 256, 256
      %19 = vsyncadd [#allocation3], %s18
      %s20 = smul.addr %s16, 128
      %s21 = scalar_lea.hbm %s0, %s20
      %s22 = sshll.u32 [#allocation2], 4
      %s23 = int_to_ptr.vmem [resolvable:$true] %s22
      %28 = dma.hbm_to_vmem [thread:$0]  %s21, 256, %s23, [#allocation3], 128, 128, 8
    $region5: #{tpu_custom_call.1} parent=1 // pred_fallthru
      _
    // Predicated region
    $region6: #{tpu_custom_call.1} parent=1 // pred_check
      _
    $region7: #{tpu_custom_call.1} parent=1 // pred_check_branch
      %30 = sbr.rel (0) target = $region9
    $region8: #{tpu_custom_call.1} parent=1 // pred_region
      %s31 = sadd.s32 0, 0
      %s32 = smul.u32 2, %s31
      %s34 = ssub.s32 256, 256
      %35 = vsyncadd [#allocation6], %s34
      %s36 = smul.addr %s32, 128
      %s37 = scalar_lea.hbm %s1, %s36
      %s38 = sshll.u32 [#allocation5], 4
      %s39 = int_to_ptr.vmem [resolvable:$true] %s38
      %44 = dma.hbm_to_vmem [thread:$0]  %s37, 256, %s39, [#allocation6], 128, 128, 8
    $region9: #{tpu_custom_call.1} parent=1 // pred_fallthru
      _
    // Predicated region
    $region10: #{tpu_custom_call.1} parent=1 // pred_check
      _
    $region11: #{tpu_custom_call.1} parent=1 // pred_check_branch
      %46 = sbr.rel (0) target = $region13
    $region12: #{tpu_custom_call.1} parent=1 // pred_region
      %47 = dma.done [#allocation3], 256
    $region13: #{tpu_custom_call.1} parent=1 // pred_fallthru
      _
    // Predicated region
    $region14: #{tpu_custom_call.1} parent=1 // pred_check
      _
    $region15: #{tpu_custom_call.1} parent=1 // pred_check_branch
      %49 = sbr.rel (0) target = $region17
    $region16: #{tpu_custom_call.1} parent=1 // pred_region
      %50 = dma.done [#allocation6], 256
    $region17: #{tpu_custom_call.1} parent=1 // pred_fallthru
      _
    %s51 = sadd.s32 0, 0
    %s52 = smul.u32 2, %s51
    %s53 = sadd.s32 0, 0
    %s54 = smul.u32 2, %s53
    %p55 = scmp.eq.s32.totalorder 0, 0
    // Predicated region
    $region18: #{tpu_custom_call.1} parent=1 // pred_check
      %p56 = pneg %p55
    $region19: #{tpu_custom_call.1} parent=1 // pred_check_branch
      %58 = sbr.rel (%p56) target = $region21
    $region20: #{tpu_custom_call.1} parent=1 // pred_region
      %59 = vst [vmem:[#allocation7] sm:$0xff] 0.0
      %60 = vst [vmem:[#allocation8] sm:$0xff] 0.0
    $region21: #{tpu_custom_call.1} parent=1 // pred_fallthru
      _
    %v61 = vld [vmem:[#allocation2] sm:$0xff]
    %v62 = vld [vmem:[#allocation2 + $0x8] sm:$0xff]
    %v63 = vld [vmem:[#allocation5] sm:$0xff]
    %v64 = vld [vmem:[#allocation5 + $0x8] sm:$0xff]
    %v65 = vld [vmem:[#allocation7] sm:$0xff]
    %v66 = vmul.f32 %v61, %v63
    %v67 = vmul.f32 %v62, %v64
    %v68 = vadd.f32 %v66, %v67
    %v69 = vadd.f32 %v65, %v68
    %70 = vst [vmem:[#allocation7] sm:$0xff] %v69
    %v71 = vld [vmem:[#allocation8] sm:$0xff]
    %v72 = vadd.f32 %v61, %v63
    %v73 = vadd.f32 %v62, %v64
    %v74 = vadd.f32 %v72, %v73
    %v75 = vadd.f32 %v71, %v74
    %76 = vst [vmem:[#allocation8] sm:$0xff] %v75
    // Predicated region
    $region22: #{tpu_custom_call.1} parent=1 // pred_check
      _
    $region23: #{tpu_custom_call.1} parent=1 // pred_check_branch
      %78 = sbr.rel (0) target = $region25
    $region24: #{tpu_custom_call.1} parent=1 // pred_region
      %s80 = ssub.s32 128, 128
      %81 = vsyncadd [#allocation4], %s80
      %s83 = sshll.u32 [#allocation7], 4
      %s84 = int_to_ptr.vmem [resolvable:$true] %s83
      %86 = dma.vmem_to_hbm [thread:$0]  %s84, 128, %s2, [#allocation4]
    $region25: #{tpu_custom_call.1} parent=1 // pred_fallthru
      _
    // Predicated region
    $region26: #{tpu_custom_call.1} parent=1 // pred_check
      _
    $region27: #{tpu_custom_call.1} parent=1 // pred_check_branch
      %88 = sbr.rel (0) target = $region29
    $region28: #{tpu_custom_call.1} parent=1 // pred_region
      %s90 = ssub.s32 128, 128
      %91 = vsyncadd [#allocation9], %s90
      %s93 = sshll.u32 [#allocation8], 4
      %s94 = int_to_ptr.vmem [resolvable:$true] %s93
      %96 = dma.vmem_to_hbm [thread:$0]  %s94, 128, %s3, [#allocation9]
    $region29: #{tpu_custom_call.1} parent=1 // pred_fallthru
      _
    // Predicated region
    $region30: #{tpu_custom_call.1} parent=1 // pred_check
      _
    $region31: #{tpu_custom_call.1} parent=1 // pred_check_branch
      %98 = sbr.rel (0) target = $region33
    $region32: #{tpu_custom_call.1} parent=1 // pred_region
      %99 = dma.done [#allocation4], 128
    $region33: #{tpu_custom_call.1} parent=1 // pred_fallthru
      _
    // Predicated region
    $region34: #{tpu_custom_call.1} parent=1 // pred_check
      _
    $region35: #{tpu_custom_call.1} parent=1 // pred_check_branch
      %101 = sbr.rel (0) target = $region37
    $region36: #{tpu_custom_call.1} parent=1 // pred_region
      %102 = dma.done [#allocation9], 128
    $region37: #{tpu_custom_call.1} parent=1 // pred_fallthru
      _
    %103 = vsyncpa [#allocation3], 1
    %104 = vsyncpa [#allocation6], 1
    %105 = vsyncpa [#allocation4], 1
    %106 = vsyncpa [#allocation9], 1

</llo_original>
